<compile_context>
chip_gen: v7x
topology: tpu7x:2x2x1
jax: 0.10.0
libtpu: 0.0.40
codegen_flags: <defaults>
</compile_context>

<pallas_src>
import functools

import jax
import jax.numpy as jnp
from jax.experimental import pallas as pl
from jax.experimental.pallas import tpu as pltpu

# ---------------------------------------------------------------------------
# Rational-form Lanczos lgamma (Numerical-Recipes coefficients).
# ---------------------------------------------------------------------------
_LANCZOS_COF = (
    76.18009172947146,
    -86.50532032941677,
    24.01409824083091,
    -1.231739572450155,
    0.1208650973866179e-2,
    -0.5395239384953e-5,
)
_LANCZOS_G0 = 1.000000000190015
_SQRT_2PI = 2.5066282746310005


def _rational_lanczos_coeffs():
    """Collapse sum_k c_k/(z+k) into N(z)/D(z); computed once in float64."""
    def pmul(a, b):
        out = [0.0] * (len(a) + len(b) - 1)
        for i, ai in enumerate(a):
            for j, bj in enumerate(b):
                out[i + j] += ai * bj
        return out

    den = [1.0]
    for k in range(1, 7):
        den = pmul(den, [float(k), 1.0])          # *(z + k), ascending coeffs
    num = [0.0] * 6
    for k in range(1, 7):
        p = [1.0]
        for m in range(1, 7):
            if m != k:
                p = pmul(p, [float(m), 1.0])
        for idx, c in enumerate(p):
            num[idx] += _LANCZOS_COF[k - 1] * c
    # Descending order for Horner evaluation.
    return tuple(num[::-1]), tuple(den[::-1])


_LNUM_DESC, _LDEN_DESC = _rational_lanczos_coeffs()


def _horner(z, coeffs_desc):
    acc = jnp.full_like(z, coeffs_desc[0])
    for c in coeffs_desc[1:]:
        acc = acc * z + c
    return acc


def _lgamma_pos(z):
    """log(Gamma(z)) for 0 < z <~ 2e6 (f32); D(z) ~ z^6 overflows far above that."""
    num = _horner(z, _LNUM_DESC)                  # VPU Horner (slack unit)
    den = _horner(z, _LDEN_DESC)
    ser = _LANCZOS_G0 + num / den                 # 1 EUP divide instead of 6
    tmp = z + 5.5
    tmp = tmp - (z + 0.5) * jnp.log(tmp)
    return -tmp + jnp.log(_SQRT_2PI * ser / z)


# ---------------------------------------------------------------------------
# Kernel
# ---------------------------------------------------------------------------
def _zinb_kernel(x_ref, mean_ref, disp_ref, pi_ref, sf_ref, out_ref, acc_ref,
                 *, ridge_lambda):
    j = pl.program_id(1)

    @pl.when(j == 0)
    def _():
        acc_ref[...] = jnp.zeros_like(acc_ref)

    eps = 1e-10
    # Upcast to f32 in-register (keeps HBM traffic at the input dtype width).
    x = x_ref[...].astype(jnp.float32)
    mean = mean_ref[...].astype(jnp.float32) * sf_ref[...].astype(jnp.float32)
    disp = disp_ref[...].astype(jnp.float32)
    pi = pi_ref[...].astype(jnp.float32)

    # Shared logs (each computed once; kernel is EUP/transcendental-bound).
    log_d = jnp.log(disp + eps)                   # log(disp + eps)
    log_m = jnp.log(mean + eps)                   # log(mean + eps)
    log_dm = jnp.log(disp + mean + eps)           # log(disp + mean + eps)

    # Negative-binomial branch.
    t1 = (_lgamma_pos(disp + eps)
          + _lgamma_pos(x + 1.0)
          - _lgamma_pos(x + disp + eps))
    # (disp + x) * log(1 + mean/(disp+eps)) + x * (log(disp+eps) - log(mean+eps))
    t2 = (disp + x) * (log_dm - log_d) + x * (log_d - log_m)
    nb_case = t1 + t2 - jnp.log(1.0 - pi + eps)

    # Zero-inflation branch: pow(disp/(disp+mean+eps), disp).
    zero_nb = jnp.exp(disp * (log_d - log_dm))
    zero_case = -jnp.log(pi + (1.0 - pi) * zero_nb + eps)

    result = jnp.where(x <= 1e-08, zero_case, nb_case)
    if ridge_lambda > 0.0:
        result = result + ridge_lambda * jnp.square(pi)

    # Lane (gene-axis) reduce per tile; accumulate per-row partials in VMEM.
    acc_ref[...] += jnp.sum(result, axis=1, keepdims=True)      # (tm, 1)

    # Finalize once per batch block: sublane reduce + lane-dense store.
    @pl.when(j == pl.num_programs(1) - 1)
    def _():
        total = jnp.sum(acc_ref[...], axis=0, keepdims=True)    # (1, 1)
        out_ref[...] = jnp.broadcast_to(total.reshape(1, 1, 1), out_ref.shape)


# ---------------------------------------------------------------------------
# Wrapper
# ---------------------------------------------------------------------------
def _choose_tile(dim, target, align):
    """Largest multiple of `align` <= target that divides dim (else full dim)."""
    if dim <= align:
        return dim
    t = max(align, (min(target, dim) // align) * align)
    while t > align and dim % t != 0:
        t -= align
    if dim % t != 0:
        return dim
    return t


def zinb_loss(x, mean, disp, pi, scale_factor, ridge_lambda=0.0,
              block_b=256, block_g=2048):
    """Pallas implementation of ZINBLoss.forward. Returns a scalar (mean NLL)."""
    B, G = x.shape
    sf = scale_factor.reshape(B, 1)               # torch: scale_factor[:, None]

    tm = _choose_tile(B, block_b, 8)
    tg = _choose_tile(G, block_g, 128)
    n_i = B // tm
    n_j = G // tg

    elem_spec = pl.BlockSpec((tm, tg), lambda i, j: (i, j))
    sf_spec = pl.BlockSpec((tm, 1), lambda i, j: (i, 0))
    out_spec = pl.BlockSpec((1, 8, 128), lambda i, j: (i, 0, 0))

    # Double-buffered input tiles + scratch + headroom.
    tile_bytes = sum(2 * tm * tg * a.dtype.itemsize for a in (x, mean, disp, pi))
    tile_bytes += 2 * tm * sf.dtype.itemsize + 2 * 8 * 128 * 4 + tm * 128 * 4
    vmem_limit = int(tile_bytes + (8 << 20))

    kernel = functools.partial(_zinb_kernel, ridge_lambda=float(ridge_lambda))

    partials = pl.pallas_call(
        kernel,
        out_shape=jax.ShapeDtypeStruct((n_i, 8, 128), jnp.float32),
        grid_spec=pltpu.PrefetchScalarGridSpec(
            num_scalar_prefetch=0,
            grid=(n_i, n_j),
            in_specs=[elem_spec, elem_spec, elem_spec, elem_spec, sf_spec],
            out_specs=out_spec,
            scratch_shapes=[pltpu.VMEM((tm, 1), jnp.float32)],
        ),
        compiler_params=pltpu.CompilerParams(
            dimension_semantics=("parallel", "arbitrary"),
            vmem_limit_bytes=vmem_limit,
        ),
    )(x, mean, disp, pi, sf)

    # Per-batch-block partial sums -> global mean.
    return jnp.sum(partials[:, 0, 0]) * (1.0 / (B * G))


def zinb_loss_ref(x, mean, disp, pi, scale_factor, ridge_lambda=0.0):
    """Pure-JAX reference (mirrors the PyTorch forward exactly)."""
    eps = 1e-10
    lgamma = jax.scipy.special.gammaln
    sf = scale_factor[:, None]
    mean = mean * sf
    t1 = lgamma(disp + eps) + lgamma(x + 1.0) - lgamma(x + disp + eps)
    t2 = ((disp + x) * jnp.log(1.0 + mean / (disp + eps))
          + x * (jnp.log(disp + eps) - jnp.log(mean + eps)))
    nb_case = (t1 + t2) - jnp.log(1.0 - pi + eps)
    zero_nb = jnp.power(disp / (disp + mean + eps), disp)
    zero_case = -jnp.log(pi + (1.0 - pi) * zero_nb + eps)
    result = jnp.where(x <= 1e-08, zero_case, nb_case)
    if ridge_lambda > 0:
        result = result + ridge_lambda * jnp.square(pi)
    return jnp.mean(result)


if __name__ == "__main__":
    # Small shapes, but sized/blocked to exercise a real (2, 4) grid:
    # batch blocks of 8 rows, gene blocks of 128 columns.
    B, G = 16, 512
    key = jax.random.PRNGKey(0)
    k1, k2, k3, k4, k5 = jax.random.split(key, 5)

    # x: non-negative counts (with exact zeros so the zero-inflation branch hits),
    # mean/disp: strictly positive, pi: dropout probabilities in (0, 1),
    # scale_factor: per-cell positive scaling.
    x = jnp.floor(jax.random.uniform(k1, (B, G), dtype=jnp.float32) * 6.0)
    mean = jnp.exp(0.5 * jax.random.normal(k2, (B, G), dtype=jnp.float32))
    disp = jnp.exp(0.5 * jax.random.normal(k3, (B, G), dtype=jnp.float32))
    pi = jax.random.uniform(k4, (B, G), dtype=jnp.float32,
                            minval=0.05, maxval=0.95)
    scale_factor = jax.random.uniform(k5, (B,), dtype=jnp.float32,
                                      minval=0.5, maxval=1.5)

    ridge_lambda = 0.1

    loss = zinb_loss(x, mean, disp, pi, scale_factor,
                     ridge_lambda=ridge_lambda, block_b=8, block_g=128)
    loss = jax.block_until_ready(loss)

    ref = zinb_loss_ref(x, mean, disp, pi, scale_factor,
                        ridge_lambda=ridge_lambda)
    assert jnp.allclose(loss, ref, rtol=1e-3, atol=1e-3), (loss, ref)

    print("KERNEL_OK")
</pallas_src>

<mosaic_0001>
module attributes {stable_mosaic.version = 11 : i64} {
  func.func @_zinb_kernel(%arg0: i32, %arg1: i32, %arg2: memref<8x128xf32, #tpu.memory_space<vmem>>, %arg3: memref<8x128xf32, #tpu.memory_space<vmem>>, %arg4: memref<8x128xf32, #tpu.memory_space<vmem>>, %arg5: memref<8x128xf32, #tpu.memory_space<vmem>>, %arg6: memref<8x1xf32, #tpu.memory_space<vmem>>, %arg7: memref<1x8x128xf32, #tpu.memory_space<vmem>>, %arg8: memref<8x1xf32, #tpu.memory_space<vmem>>) attributes {dimension_semantics = [#tpu.dimension_semantics<parallel>, #tpu.dimension_semantics<arbitrary>], iteration_bounds = array<i64: 2, 4>, scalar_prefetch = 0 : i64, scratch_operands = 1 : i64, tpu.core_type = #tpu.core_type<tc>, window_params = [{transform_indices = @transform_0, window_bounds = array<i64: 8, 128>}, {transform_indices = @transform_1, window_bounds = array<i64: 8, 128>}, {transform_indices = @transform_2, window_bounds = array<i64: 8, 128>}, {transform_indices = @transform_3, window_bounds = array<i64: 8, 128>}, {transform_indices = @transform_4, window_bounds = array<i64: 8, 1>}, {transform_indices = @transform_5, window_bounds = array<i64: 1, 8, 128>}]} {
    %c0_i32 = arith.constant 0 : i32
    %0 = arith.cmpi eq, %arg1, %c0_i32 : i32
    %1 = arith.extui %0 : i1 to i32
    %c0_i32_0 = arith.constant 0 : i32
    %2 = arith.cmpi ne, %1, %c0_i32_0 : i32
    scf.if %2 {
      %cst_82 = arith.constant 0.000000e+00 : f32
      %225 = vector.broadcast %cst_82 : f32 to vector<8x1xf32>
      %c0_83 = arith.constant 0 : index
      %c0_84 = arith.constant 0 : index
      %226 = vector.load %arg8[%c0_83, %c0_84] : memref<8x1xf32, #tpu.memory_space<vmem>>, vector<8x1xf32>
      tpu.vector_store %arg8[%c0_83, %c0_84], %225 {strides = array<i32>} : memref<8x1xf32, #tpu.memory_space<vmem>>, vector<8x1xf32>,
    } else {
    }
    %c0 = arith.constant 0 : index
    %c0_1 = arith.constant 0 : index
    %3 = vector.load %arg2[%c0, %c0_1] : memref<8x128xf32, #tpu.memory_space<vmem>>, vector<8x128xf32>
    %c0_2 = arith.constant 0 : index
    %c0_3 = arith.constant 0 : index
    %4 = vector.load %arg3[%c0_2, %c0_3] : memref<8x128xf32, #tpu.memory_space<vmem>>, vector<8x128xf32>
    %c0_4 = arith.constant 0 : index
    %c0_5 = arith.constant 0 : index
    %5 = vector.load %arg6[%c0_4, %c0_5] : memref<8x1xf32, #tpu.memory_space<vmem>>, vector<8x1xf32>
    %6 = vector.broadcast %5 : vector<8x1xf32> to vector<8x128xf32>
    %7 = arith.mulf %4, %6 : vector<8x128xf32>
    %c0_6 = arith.constant 0 : index
    %c0_7 = arith.constant 0 : index
    %8 = vector.load %arg4[%c0_6, %c0_7] : memref<8x128xf32, #tpu.memory_space<vmem>>, vector<8x128xf32>
    %c0_8 = arith.constant 0 : index
    %c0_9 = arith.constant 0 : index
    %9 = vector.load %arg5[%c0_8, %c0_9] : memref<8x128xf32, #tpu.memory_space<vmem>>, vector<8x128xf32>
    %cst = arith.constant 1.000000e-10 : f32
    %10 = vector.broadcast %cst : f32 to vector<8x128xf32>
    %11 = arith.addf %8, %10 : vector<8x128xf32>
    %12 = math.log %11 : vector<8x128xf32>
    %cst_10 = arith.constant 1.000000e-10 : f32
    %13 = vector.broadcast %cst_10 : f32 to vector<8x128xf32>
    %14 = arith.addf %7, %13 : vector<8x128xf32>
    %15 = math.log %14 : vector<8x128xf32>
    %16 = arith.addf %8, %7 : vector<8x128xf32>
    %cst_11 = arith.constant 1.000000e-10 : f32
    %17 = vector.broadcast %cst_11 : f32 to vector<8x128xf32>
    %18 = arith.addf %16, %17 : vector<8x128xf32>
    %19 = math.log %18 : vector<8x128xf32>
    %cst_12 = arith.constant 1.000000e-10 : f32
    %20 = vector.broadcast %cst_12 : f32 to vector<8x128xf32>
    %21 = arith.addf %8, %20 : vector<8x128xf32>
    %cst_13 = arith.constant 12.458333 : f32
    %22 = vector.broadcast %cst_13 : f32 to vector<8x128xf32>
    %23 = arith.mulf %22, %21 : vector<8x128xf32>
    %cst_14 = arith.constant 291.334198 : f32
    %24 = vector.broadcast %cst_14 : f32 to vector<8x128xf32>
    %25 = arith.addf %23, %24 : vector<8x128xf32>
    %26 = arith.mulf %25, %21 : vector<8x128xf32>
    %cst_15 = arith.constant 2730.70947 : f32
    %27 = vector.broadcast %cst_15 : f32 to vector<8x128xf32>
    %28 = arith.addf %26, %27 : vector<8x128xf32>
    %29 = arith.mulf %28, %21 : vector<8x128xf32>
    %cst_16 = arith.constant 12860.9141 : f32
    %30 = vector.broadcast %cst_16 : f32 to vector<8x128xf32>
    %31 = arith.addf %29, %30 : vector<8x128xf32>
    %32 = arith.mulf %31, %21 : vector<8x128xf32>
    %cst_17 = arith.constant 30517.0645 : f32
    %33 = vector.broadcast %cst_17 : f32 to vector<8x128xf32>
    %34 = arith.addf %32, %33 : vector<8x128xf32>
    %35 = arith.mulf %34, %21 : vector<8x128xf32>
    %cst_18 = arith.constant 29249.5938 : f32
    %36 = vector.broadcast %cst_18 : f32 to vector<8x128xf32>
    %37 = arith.addf %35, %36 : vector<8x128xf32>
    %cst_19 = arith.constant 1.000000e+00 : f32
    %38 = vector.broadcast %cst_19 : f32 to vector<8x128xf32>
    %39 = arith.mulf %38, %21 : vector<8x128xf32>
    %cst_20 = arith.constant 2.100000e+01 : f32
    %40 = vector.broadcast %cst_20 : f32 to vector<8x128xf32>
    %41 = arith.addf %39, %40 : vector<8x128xf32>
    %42 = arith.mulf %41, %21 : vector<8x128xf32>
    %cst_21 = arith.constant 1.750000e+02 : f32
    %43 = vector.broadcast %cst_21 : f32 to vector<8x128xf32>
    %44 = arith.addf %42, %43 : vector<8x128xf32>
    %45 = arith.mulf %44, %21 : vector<8x128xf32>
    %cst_22 = arith.constant 7.350000e+02 : f32
    %46 = vector.broadcast %cst_22 : f32 to vector<8x128xf32>
    %47 = arith.addf %45, %46 : vector<8x128xf32>
    %48 = arith.mulf %47, %21 : vector<8x128xf32>
    %cst_23 = arith.constant 1.624000e+03 : f32
    %49 = vector.broadcast %cst_23 : f32 to vector<8x128xf32>
    %50 = arith.addf %48, %49 : vector<8x128xf32>
    %51 = arith.mulf %50, %21 : vector<8x128xf32>
    %cst_24 = arith.constant 1.764000e+03 : f32
    %52 = vector.broadcast %cst_24 : f32 to vector<8x128xf32>
    %53 = arith.addf %51, %52 : vector<8x128xf32>
    %54 = arith.mulf %53, %21 : vector<8x128xf32>
    %cst_25 = arith.constant 7.200000e+02 : f32
    %55 = vector.broadcast %cst_25 : f32 to vector<8x128xf32>
    %56 = arith.addf %54, %55 : vector<8x128xf32>
    %57 = arith.divf %37, %56 : vector<8x128xf32>
    %cst_26 = arith.constant 1.000000e+00 : f32
    %58 = vector.broadcast %cst_26 : f32 to vector<8x128xf32>
    %59 = arith.addf %58, %57 : vector<8x128xf32>
    %cst_27 = arith.constant 5.500000e+00 : f32
    %60 = vector.broadcast %cst_27 : f32 to vector<8x128xf32>
    %61 = arith.addf %21, %60 : vector<8x128xf32>
    %cst_28 = arith.constant 5.000000e-01 : f32
    %62 = vector.broadcast %cst_28 : f32 to vector<8x128xf32>
    %63 = arith.addf %21, %62 : vector<8x128xf32>
    %64 = math.log %61 : vector<8x128xf32>
    %65 = arith.mulf %63, %64 : vector<8x128xf32>
    %66 = arith.subf %61, %65 : vector<8x128xf32>
    %cst_29 = arith.constant 0.000000e+00 : f32
    %67 = vector.broadcast %cst_29 : f32 to vector<8x128xf32>
    %68 = arith.subf %67, %66 : vector<8x128xf32>
    %cst_30 = arith.constant 2.50662827 : f32
    %69 = vector.broadcast %cst_30 : f32 to vector<8x128xf32>
    %70 = arith.mulf %69, %59 : vector<8x128xf32>
    %71 = arith.divf %70, %21 : vector<8x128xf32>
    %72 = math.log %71 : vector<8x128xf32>
    %73 = arith.addf %68, %72 : vector<8x128xf32>
    %cst_31 = arith.constant 1.000000e+00 : f32
    %74 = vector.broadcast %cst_31 : f32 to vector<8x128xf32>
    %75 = arith.addf %3, %74 : vector<8x128xf32>
    %cst_32 = arith.constant 12.458333 : f32
    %76 = vector.broadcast %cst_32 : f32 to vector<8x128xf32>
    %77 = arith.mulf %76, %75 : vector<8x128xf32>
    %cst_33 = arith.constant 291.334198 : f32
    %78 = vector.broadcast %cst_33 : f32 to vector<8x128xf32>
    %79 = arith.addf %77, %78 : vector<8x128xf32>
    %80 = arith.mulf %79, %75 : vector<8x128xf32>
    %cst_34 = arith.constant 2730.70947 : f32
    %81 = vector.broadcast %cst_34 : f32 to vector<8x128xf32>
    %82 = arith.addf %80, %81 : vector<8x128xf32>
    %83 = arith.mulf %82, %75 : vector<8x128xf32>
    %cst_35 = arith.constant 12860.9141 : f32
    %84 = vector.broadcast %cst_35 : f32 to vector<8x128xf32>
    %85 = arith.addf %83, %84 : vector<8x128xf32>
    %86 = arith.mulf %85, %75 : vector<8x128xf32>
    %cst_36 = arith.constant 30517.0645 : f32
    %87 = vector.broadcast %cst_36 : f32 to vector<8x128xf32>
    %88 = arith.addf %86, %87 : vector<8x128xf32>
    %89 = arith.mulf %88, %75 : vector<8x128xf32>
    %cst_37 = arith.constant 29249.5938 : f32
    %90 = vector.broadcast %cst_37 : f32 to vector<8x128xf32>
    %91 = arith.addf %89, %90 : vector<8x128xf32>
    %cst_38 = arith.constant 1.000000e+00 : f32
    %92 = vector.broadcast %cst_38 : f32 to vector<8x128xf32>
    %93 = arith.mulf %92, %75 : vector<8x128xf32>
    %cst_39 = arith.constant 2.100000e+01 : f32
    %94 = vector.broadcast %cst_39 : f32 to vector<8x128xf32>
    %95 = arith.addf %93, %94 : vector<8x128xf32>
    %96 = arith.mulf %95, %75 : vector<8x128xf32>
    %cst_40 = arith.constant 1.750000e+02 : f32
    %97 = vector.broadcast %cst_40 : f32 to vector<8x128xf32>
    %98 = arith.addf %96, %97 : vector<8x128xf32>
    %99 = arith.mulf %98, %75 : vector<8x128xf32>
    %cst_41 = arith.constant 7.350000e+02 : f32
    %100 = vector.broadcast %cst_41 : f32 to vector<8x128xf32>
    %101 = arith.addf %99, %100 : vector<8x128xf32>
    %102 = arith.mulf %101, %75 : vector<8x128xf32>
    %cst_42 = arith.constant 1.624000e+03 : f32
    %103 = vector.broadcast %cst_42 : f32 to vector<8x128xf32>
    %104 = arith.addf %102, %103 : vector<8x128xf32>
    %105 = arith.mulf %104, %75 : vector<8x128xf32>
    %cst_43 = arith.constant 1.764000e+03 : f32
    %106 = vector.broadcast %cst_43 : f32 to vector<8x128xf32>
    %107 = arith.addf %105, %106 : vector<8x128xf32>
    %108 = arith.mulf %107, %75 : vector<8x128xf32>
    %cst_44 = arith.constant 7.200000e+02 : f32
    %109 = vector.broadcast %cst_44 : f32 to vector<8x128xf32>
    %110 = arith.addf %108, %109 : vector<8x128xf32>
    %111 = arith.divf %91, %110 : vector<8x128xf32>
    %cst_45 = arith.constant 1.000000e+00 : f32
    %112 = vector.broadcast %cst_45 : f32 to vector<8x128xf32>
    %113 = arith.addf %112, %111 : vector<8x128xf32>
    %cst_46 = arith.constant 5.500000e+00 : f32
    %114 = vector.broadcast %cst_46 : f32 to vector<8x128xf32>
    %115 = arith.addf %75, %114 : vector<8x128xf32>
    %cst_47 = arith.constant 5.000000e-01 : f32
    %116 = vector.broadcast %cst_47 : f32 to vector<8x128xf32>
    %117 = arith.addf %75, %116 : vector<8x128xf32>
    %118 = math.log %115 : vector<8x128xf32>
    %119 = arith.mulf %117, %118 : vector<8x128xf32>
    %120 = arith.subf %115, %119 : vector<8x128xf32>
    %cst_48 = arith.constant 0.000000e+00 : f32
    %121 = vector.broadcast %cst_48 : f32 to vector<8x128xf32>
    %122 = arith.subf %121, %120 : vector<8x128xf32>
    %cst_49 = arith.constant 2.50662827 : f32
    %123 = vector.broadcast %cst_49 : f32 to vector<8x128xf32>
    %124 = arith.mulf %123, %113 : vector<8x128xf32>
    %125 = arith.divf %124, %75 : vector<8x128xf32>
    %126 = math.log %125 : vector<8x128xf32>
    %127 = arith.addf %122, %126 : vector<8x128xf32>
    %128 = arith.addf %73, %127 : vector<8x128xf32>
    %129 = arith.addf %3, %8 : vector<8x128xf32>
    %cst_50 = arith.constant 1.000000e-10 : f32
    %130 = vector.broadcast %cst_50 : f32 to vector<8x128xf32>
    %131 = arith.addf %129, %130 : vector<8x128xf32>
    %cst_51 = arith.constant 12.458333 : f32
    %132 = vector.broadcast %cst_51 : f32 to vector<8x128xf32>
    %133 = arith.mulf %132, %131 : vector<8x128xf32>
    %cst_52 = arith.constant 291.334198 : f32
    %134 = vector.broadcast %cst_52 : f32 to vector<8x128xf32>
    %135 = arith.addf %133, %134 : vector<8x128xf32>
    %136 = arith.mulf %135, %131 : vector<8x128xf32>
    %cst_53 = arith.constant 2730.70947 : f32
    %137 = vector.broadcast %cst_53 : f32 to vector<8x128xf32>
    %138 = arith.addf %136, %137 : vector<8x128xf32>
    %139 = arith.mulf %138, %131 : vector<8x128xf32>
    %cst_54 = arith.constant 12860.9141 : f32
    %140 = vector.broadcast %cst_54 : f32 to vector<8x128xf32>
    %141 = arith.addf %139, %140 : vector<8x128xf32>
    %142 = arith.mulf %141, %131 : vector<8x128xf32>
    %cst_55 = arith.constant 30517.0645 : f32
    %143 = vector.broadcast %cst_55 : f32 to vector<8x128xf32>
    %144 = arith.addf %142, %143 : vector<8x128xf32>
    %145 = arith.mulf %144, %131 : vector<8x128xf32>
    %cst_56 = arith.constant 29249.5938 : f32
    %146 = vector.broadcast %cst_56 : f32 to vector<8x128xf32>
    %147 = arith.addf %145, %146 : vector<8x128xf32>
    %cst_57 = arith.constant 1.000000e+00 : f32
    %148 = vector.broadcast %cst_57 : f32 to vector<8x128xf32>
    %149 = arith.mulf %148, %131 : vector<8x128xf32>
    %cst_58 = arith.constant 2.100000e+01 : f32
    %150 = vector.broadcast %cst_58 : f32 to vector<8x128xf32>
    %151 = arith.addf %149, %150 : vector<8x128xf32>
    %152 = arith.mulf %151, %131 : vector<8x128xf32>
    %cst_59 = arith.constant 1.750000e+02 : f32
    %153 = vector.broadcast %cst_59 : f32 to vector<8x128xf32>
    %154 = arith.addf %152, %153 : vector<8x128xf32>
    %155 = arith.mulf %154, %131 : vector<8x128xf32>
    %cst_60 = arith.constant 7.350000e+02 : f32
    %156 = vector.broadcast %cst_60 : f32 to vector<8x128xf32>
    %157 = arith.addf %155, %156 : vector<8x128xf32>
    %158 = arith.mulf %157, %131 : vector<8x128xf32>
    %cst_61 = arith.constant 1.624000e+03 : f32
    %159 = vector.broadcast %cst_61 : f32 to vector<8x128xf32>
    %160 = arith.addf %158, %159 : vector<8x128xf32>
    %161 = arith.mulf %160, %131 : vector<8x128xf32>
    %cst_62 = arith.constant 1.764000e+03 : f32
    %162 = vector.broadcast %cst_62 : f32 to vector<8x128xf32>
    %163 = arith.addf %161, %162 : vector<8x128xf32>
    %164 = arith.mulf %163, %131 : vector<8x128xf32>
    %cst_63 = arith.constant 7.200000e+02 : f32
    %165 = vector.broadcast %cst_63 : f32 to vector<8x128xf32>
    %166 = arith.addf %164, %165 : vector<8x128xf32>
    %167 = arith.divf %147, %166 : vector<8x128xf32>
    %cst_64 = arith.constant 1.000000e+00 : f32
    %168 = vector.broadcast %cst_64 : f32 to vector<8x128xf32>
    %169 = arith.addf %168, %167 : vector<8x128xf32>
    %cst_65 = arith.constant 5.500000e+00 : f32
    %170 = vector.broadcast %cst_65 : f32 to vector<8x128xf32>
    %171 = arith.addf %131, %170 : vector<8x128xf32>
    %cst_66 = arith.constant 5.000000e-01 : f32
    %172 = vector.broadcast %cst_66 : f32 to vector<8x128xf32>
    %173 = arith.addf %131, %172 : vector<8x128xf32>
    %174 = math.log %171 : vector<8x128xf32>
    %175 = arith.mulf %173, %174 : vector<8x128xf32>
    %176 = arith.subf %171, %175 : vector<8x128xf32>
    %cst_67 = arith.constant 0.000000e+00 : f32
    %177 = vector.broadcast %cst_67 : f32 to vector<8x128xf32>
    %178 = arith.subf %177, %176 : vector<8x128xf32>
    %cst_68 = arith.constant 2.50662827 : f32
    %179 = vector.broadcast %cst_68 : f32 to vector<8x128xf32>
    %180 = arith.mulf %179, %169 : vector<8x128xf32>
    %181 = arith.divf %180, %131 : vector<8x128xf32>
    %182 = math.log %181 : vector<8x128xf32>
    %183 = arith.addf %178, %182 : vector<8x128xf32>
    %184 = arith.subf %128, %183 : vector<8x128xf32>
    %185 = arith.addf %8, %3 : vector<8x128xf32>
    %186 = arith.subf %19, %12 : vector<8x128xf32>
    %187 = arith.mulf %185, %186 : vector<8x128xf32>
    %188 = arith.subf %12, %15 : vector<8x128xf32>
    %189 = arith.mulf %3, %188 : vector<8x128xf32>
    %190 = arith.addf %187, %189 : vector<8x128xf32>
    %191 = arith.addf %184, %190 : vector<8x128xf32>
    %cst_69 = arith.constant 1.000000e+00 : f32
    %192 = vector.broadcast %cst_69 : f32 to vector<8x128xf32>
    %193 = arith.subf %192, %9 : vector<8x128xf32>
    %cst_70 = arith.constant 1.000000e-10 : f32
    %194 = vector.broadcast %cst_70 : f32 to vector<8x128xf32>
    %195 = arith.addf %193, %194 : vector<8x128xf32>
    %196 = math.log %195 : vector<8x128xf32>
    %197 = arith.subf %191, %196 : vector<8x128xf32>
    %198 = arith.subf %12, %19 : vector<8x128xf32>
    %199 = arith.mulf %8, %198 : vector<8x128xf32>
    %200 = math.exp %199 : vector<8x128xf32>
    %cst_71 = arith.constant 1.000000e+00 : f32
    %201 = vector.broadcast %cst_71 : f32 to vector<8x128xf32>
    %202 = arith.subf %201, %9 : vector<8x128xf32>
    %203 = arith.mulf %202, %200 : vector<8x128xf32>
    %204 = arith.addf %9, %203 : vector<8x128xf32>
    %cst_72 = arith.constant 1.000000e-10 : f32
    %205 = vector.broadcast %cst_72 : f32 to vector<8x128xf32>
    %206 = arith.addf %204, %205 : vector<8x128xf32>
    %207 = math.log %206 : vector<8x128xf32>
    %cst_73 = arith.constant 0.000000e+00 : f32
    %208 = vector.broadcast %cst_73 : f32 to vector<8x128xf32>
    %209 = arith.subf %208, %207 : vector<8x128xf32>
    %cst_74 = arith.constant 9.99999993E-9 : f32
    %210 = vector.broadcast %cst_74 : f32 to vector<8x128xf32>
    %211 = arith.cmpf ole, %3, %210 : vector<8x128xf32>
    %212 = arith.select %211, %209, %197 : vector<8x128xi1>, vector<8x128xf32>
    %213 = arith.mulf %9, %9 : vector<8x128xf32>
    %cst_75 = arith.constant 1.000000e-01 : f32
    %214 = vector.broadcast %cst_75 : f32 to vector<8x128xf32>
    %215 = arith.mulf %214, %213 : vector<8x128xf32>
    %216 = arith.addf %212, %215 : vector<8x128xf32>
    %c0_76 = arith.constant 0 : index
    %c0_77 = arith.constant 0 : index
    %217 = vector.load %arg8[%c0_76, %c0_77] : memref<8x1xf32, #tpu.memory_space<vmem>>, vector<8x1xf32>
    %cst_78 = arith.constant dense<0.000000e+00> : vector<8xf32>
    %218 = vector.multi_reduction <add>, %216, %cst_78 [1] : vector<8x128xf32> to vector<8xf32>
    %219 = vector.shape_cast %218 : vector<8xf32> to vector<8x1xf32>
    %220 = arith.addf %217, %219 : vector<8x1xf32>
    %c0_79 = arith.constant 0 : index
    %c0_80 = arith.constant 0 : index
    %221 = vector.load %arg8[%c0_79, %c0_80] : memref<8x1xf32, #tpu.memory_space<vmem>>, vector<8x1xf32>
    tpu.vector_store %arg8[%c0_79, %c0_80], %220 {strides = array<i32>} : memref<8x1xf32, #tpu.memory_space<vmem>>, vector<8x1xf32>,
    %c3_i32 = arith.constant 3 : i32
    %222 = arith.cmpi eq, %arg1, %c3_i32 : i32
    %223 = arith.extui %222 : i1 to i32
    %c0_i32_81 = arith.constant 0 : i32
    %224 = arith.cmpi ne, %223, %c0_i32_81 : i32
    scf.if %224 {
      %c0_82 = arith.constant 0 : index
      %c0_83 = arith.constant 0 : index
      %225 = vector.load %arg8[%c0_82, %c0_83] : memref<8x1xf32, #tpu.memory_space<vmem>>, vector<8x1xf32>
      %cst_84 = arith.constant dense<0.000000e+00> : vector<1xf32>
      %226 = vector.multi_reduction <add>, %225, %cst_84 [0] : vector<8x1xf32> to vector<1xf32>
      %227 = vector.shape_cast %226 : vector<1xf32> to vector<1x1xf32>
      %228 = vector.shape_cast %227 : vector<1x1xf32> to vector<1x1x1xf32>
      %229 = vector.shape_cast %228 : vector<1x1x1xf32> to vector<1x1x1xf32>
      %230 = vector.broadcast %229 : vector<1x1x1xf32> to vector<1x8x128xf32>
      %c0_85 = arith.constant 0 : index
      %c0_86 = arith.constant 0 : index
      %c0_87 = arith.constant 0 : index
      %231 = vector.load %arg7[%c0_85, %c0_86, %c0_87] : memref<1x8x128xf32, #tpu.memory_space<vmem>>, vector<1x8x128xf32>
      tpu.vector_store %arg7[%c0_85, %c0_86, %c0_87], %230 {strides = array<i32>} : memref<1x8x128xf32, #tpu.memory_space<vmem>>, vector<1x8x128xf32>,
    } else {
    }
    return
  }
  func.func @transform_0(%arg0: i32, %arg1: i32) -> (i32, i32) {
    %c0_i32 = arith.constant 0 : i32
    return %arg0, %arg1 : i32, i32
  }
  func.func @transform_1(%arg0: i32, %arg1: i32) -> (i32, i32) {
    %c0_i32 = arith.constant 0 : i32
    return %arg0, %arg1 : i32, i32
  }
  func.func @transform_2(%arg0: i32, %arg1: i32) -> (i32, i32) {
    %c0_i32 = arith.constant 0 : i32
    return %arg0, %arg1 : i32, i32
  }
  func.func @transform_3(%arg0: i32, %arg1: i32) -> (i32, i32) {
    %c0_i32 = arith.constant 0 : i32
    return %arg0, %arg1 : i32, i32
  }
  func.func @transform_4(%arg0: i32, %arg1: i32) -> (i32, i32) {
    %c0_i32 = arith.constant 0 : i32
    %c0_i32_0 = arith.constant 0 : i32
    return %arg0, %c0_i32 : i32, i32
  }
  func.func @transform_5(%arg0: i32, %arg1: i32) -> (i32, i32, i32) {
    %c0_i32 = arith.constant 0 : i32
    %c0_i32_0 = arith.constant 0 : i32
    %c0_i32_1 = arith.constant 0 : i32
    return %arg0, %c0_i32, %c0_i32_0 : i32, i32, i32
  }
}

</mosaic_0001>

<llo_original>
// kernel: tpu_custom_call.1
$region0: #{tpu_custom_call.1}
  #allocation0 [shape = 'u32[]', space=smem, size = 0x4, offset = 0x4, fixed_abs, tag = 'smem constant byte address 0x4 - core index']
  #allocation1 [shape = 'u32[144,128]{1,0:T(1,128)}', space=vmem, size = 0x12000, scoped, tag = 'internal scratch']
  #allocation2 [shape = 'f32[8,1]{1,0:T(8,128)}', space=vmem, size = 0x1000, scoped, tag = 'scratch operand']
  %s0 = inlined_call_operand.hbm [shape: f32[16,512], index: 0, kind: input, shape index: {}]
  %s1 = inlined_call_operand.hbm [shape: f32[16,512], index: 1, kind: input, shape index: {}]
  %s2 = inlined_call_operand.hbm [shape: f32[16,512], index: 2, kind: input, shape index: {}]
  %s3 = inlined_call_operand.hbm [shape: f32[16,512], index: 3, kind: input, shape index: {}]
  %s4 = inlined_call_operand.vmem [shape: f32[16,1], index: 4, kind: input, shape index: {}]
  %s5 = inlined_call_operand.hbm [shape: f32[2,8,128], index: 5, kind: output, shape index: {}]
  %s6 = sld [smem:[#allocation0]]
  $region77: #{tpu_custom_call.1} parent=0
    _
  %s8 = ssub.s32 1, %s6
  %s9 = scalar_select 0, %s8, %s6
  $region1: #{tpu_custom_call.1} parent=0
    #allocation3 [shape = 'u8[8192]{0}', space=vmem, size = 0x2000, scoped, tag = 'input window, operand 0']
    #allocation4 [shape = 's32[2]{0}', space=sflag, size = 0x8, scoped, tag = 'scoped memory for tpu_custom_call.1']
    #allocation5 [shape = 's32[2]{0}', space=sflag, size = 0x8, scoped, tag = 'scoped memory for tpu_custom_call.1']
    #allocation6 [shape = 'u8[8192]{0}', space=vmem, size = 0x2000, scoped, tag = 'input window, operand 1']
    #allocation7 [shape = 's32[2]{0}', space=sflag, size = 0x8, scoped, tag = 'scoped memory for tpu_custom_call.1']
    #allocation8 [shape = 'u8[8192]{0}', space=vmem, size = 0x2000, scoped, tag = 'input window, operand 2']
    #allocation9 [shape = 'u8[8192]{0}', space=vmem, size = 0x2000, scoped, tag = 'input window, operand 3']
    #allocation10 [shape = 's32[2]{0}', space=sflag, size = 0x8, scoped, tag = 'scoped memory for tpu_custom_call.1']
    #allocation11 [shape = 'u8[8192]{0}', space=vmem, size = 0x2000, scoped, tag = 'output window, operand 0']
    %10 = vsyncpa [#allocation4], 0
    %s11 = scalar_lea.sflag [#allocation4], 1
    %12 = vsyncpa %s11, 0
    %13 = vsyncpa [#allocation7], 0
    %s14 = scalar_lea.sflag [#allocation7], 1
    %15 = vsyncpa %s14, 0
    %16 = vsyncpa [#allocation10], 0
    %s17 = scalar_lea.sflag [#allocation10], 1
    %18 = vsyncpa %s17, 0
    %19 = vsyncpa [#allocation5], 0
    %s20 = scalar_lea.sflag [#allocation5], 1
    %21 = vsyncpa %s20, 0
    loop: start=0, step=1, limit=10
    $region2: #{tpu_custom_call.1} parent=1 // loop_pre_header
      _
    $region3: #{tpu_custom_call.1} parent=1 // loop_header
      %s23 = sphi 0, %s27
      %p24 = scmp.ge.s32.totalorder %s23, 10
      %s30 = sphi 0, %s42
      %s31 = sphi 0, %s38
      %s32 = sphi 0, %s30
      %s33 = sphi 0, %s31
      %s34 = sphi 0, %s32
      %s35 = sphi 0, %s33
      %s47 = sphi 0, %s49
      %s50 = sphi 0, %s47
      %s51 = sphi 0, %s50
      %s67 = sphi 0, %s51
      %s75 = sphi 0, %s77
      %s78 = sphi 0, %s75
      %s79 = sphi 0, %s78
      %s95 = sphi 0, %s79
      %s103 = sphi 0, %s105
      %s106 = sphi 0, %s103
      %s107 = sphi 0, %s106
      %s123 = sphi 0, %s107
      %s131 = sphi 0, %s133
      %s134 = sphi 0, %s131
      %s135 = sphi 0, %s134
      %s151 = sphi 0, %s135
      %s157 = sphi 0, %s159
      %s160 = sphi 0, %s157
      %s161 = sphi 0, %s160
      %s177 = sphi 0, %s161
      %s183 = sphi 0, %s185
      %s186 = sphi 0, %s183
      %s187 = sphi 0, %s186
      %s203 = sphi 0, %s187
    $region4: #{tpu_custom_call.1} parent=1 // loop_header_branch
      %26 = sbr.rel (%p24) target = $region8
    $region5: #{tpu_custom_call.1} parent=1 // loop_body
      %s28 = ssub.s32 %s23, 1
      %s29 = ssub.s32 %s23, 2
      %s36 = sadd.s32 1, %s31
      %p37 = scmp.ge.s32.totalorder %s36, 4
      %s38 = scalar_select %p37, 0, %s36
      %s39 = sadd.s32 1, %s30
      %s40 = scalar_select %p37, %s39, %s30
      %p41 = scmp.ge.s32.totalorder %s40, 2
      %s42 = scalar_select %p41, 0, %s40
      %s43 = ssub.s32 %s30, %s42
      %s44 = ssub.s32 %s31, %s38
      %s45 = sor.u32 %s43, %s44
      %p46 = scmp.eq.s32.totalorder %s45, 0
      %s48 = sadd.s32 %s47, 1
      %s49 = scalar_select %p46, %s47, %s48
      %p52 = pneg %p46
      %p53 = scmp.eq.s32.totalorder %s23, 7
      %p54 = por %p52, %p53
      %p55 = scmp.ne.s32.totalorder %s47, %s50
      %p56 = scmp.eq.s32.totalorder %s23, 0
      %p57 = por %p55, %p56
      %p58 = scmp.ne.s32.totalorder %s47, %s50
      %p59 = scmp.eq.s32.totalorder %s28, 7
      %p60 = por %p58, %p59
      %p61 = scmp.ne.s32.totalorder %s50, %s51
      %p62 = scmp.eq.s32.totalorder %s28, 0
      %p63 = por %p61, %p62
      %p64 = scmp.ne.s32.totalorder %s50, %s51
      %p65 = scmp.eq.s32.totalorder %s29, 7
      %p66 = por %p64, %p65
      %p68 = scmp.ne.s32.totalorder %s51, %s67
      %p69 = scmp.eq.s32.totalorder %s29, 0
      %p70 = por %p68, %p69
      %s71 = ssub.s32 %s30, %s42
      %s72 = ssub.s32 %s31, %s38
      %s73 = sor.u32 %s71, %s72
      %p74 = scmp.eq.s32.totalorder %s73, 0
      %s76 = sadd.s32 %s75, 1
      %s77 = scalar_select %p74, %s75, %s76
      %p80 = pneg %p74
      %p81 = scmp.eq.s32.totalorder %s23, 7
      %p82 = por %p80, %p81
      %p83 = scmp.ne.s32.totalorder %s75, %s78
      %p84 = scmp.eq.s32.totalorder %s23, 0
      %p85 = por %p83, %p84
      %p86 = scmp.ne.s32.totalorder %s75, %s78
      %p87 = scmp.eq.s32.totalorder %s28, 7
      %p88 = por %p86, %p87
      %p89 = scmp.ne.s32.totalorder %s78, %s79
      %p90 = scmp.eq.s32.totalorder %s28, 0
      %p91 = por %p89, %p90
      %p92 = scmp.ne.s32.totalorder %s78, %s79
      %p93 = scmp.eq.s32.totalorder %s29, 7
      %p94 = por %p92, %p93
      %p96 = scmp.ne.s32.totalorder %s79, %s95
      %p97 = scmp.eq.s32.totalorder %s29, 0
      %p98 = por %p96, %p97
      %s99 = ssub.s32 %s30, %s42
      %s100 = ssub.s32 %s31, %s38
      %s101 = sor.u32 %s99, %s100
      %p102 = scmp.eq.s32.totalorder %s101, 0
      %s104 = sadd.s32 %s103, 1
      %s105 = scalar_select %p102, %s103, %s104
      %p108 = pneg %p102
      %p109 = scmp.eq.s32.totalorder %s23, 7
      %p110 = por %p108, %p109
      %p111 = scmp.ne.s32.totalorder %s103, %s106
      %p112 = scmp.eq.s32.totalorder %s23, 0
      %p113 = por %p111, %p112
      %p114 = scmp.ne.s32.totalorder %s103, %s106
      %p115 = scmp.eq.s32.totalorder %s28, 7
      %p116 = por %p114, %p115
      %p117 = scmp.ne.s32.totalorder %s106, %s107
      %p118 = scmp.eq.s32.totalorder %s28, 0
      %p119 = por %p117, %p118
      %p120 = scmp.ne.s32.totalorder %s106, %s107
      %p121 = scmp.eq.s32.totalorder %s29, 7
      %p122 = por %p120, %p121
      %p124 = scmp.ne.s32.totalorder %s107, %s123
      %p125 = scmp.eq.s32.totalorder %s29, 0
      %p126 = por %p124, %p125
      %s127 = ssub.s32 %s30, %s42
      %s128 = ssub.s32 %s31, %s38
      %s129 = sor.u32 %s127, %s128
      %p130 = scmp.eq.s32.totalorder %s129, 0
      %s132 = sadd.s32 %s131, 1
      %s133 = scalar_select %p130, %s131, %s132
      %p136 = pneg %p130
      %p137 = scmp.eq.s32.totalorder %s23, 7
      %p138 = por %p136, %p137
      %p139 = scmp.ne.s32.totalorder %s131, %s134
      %p140 = scmp.eq.s32.totalorder %s23, 0
      %p141 = por %p139, %p140
      %p142 = scmp.ne.s32.totalorder %s131, %s134
      %p143 = scmp.eq.s32.totalorder %s28, 7
      %p144 = por %p142, %p143
      %p145 = scmp.ne.s32.totalorder %s134, %s135
      %p146 = scmp.eq.s32.totalorder %s28, 0
      %p147 = por %p145, %p146
      %p148 = scmp.ne.s32.totalorder %s134, %s135
      %p149 = scmp.eq.s32.totalorder %s29, 7
      %p150 = por %p148, %p149
      %p152 = scmp.ne.s32.totalorder %s135, %s151
      %p153 = scmp.eq.s32.totalorder %s29, 0
      %p154 = por %p152, %p153
      %s155 = ssub.s32 %s30, %s42
      %p156 = scmp.eq.s32.totalorder %s155, 0
      %s158 = sadd.s32 %s157, 1
      %s159 = scalar_select %p156, %s157, %s158
      %p162 = pneg %p156
      %p163 = scmp.eq.s32.totalorder %s23, 7
      %p164 = por %p162, %p163
      %p165 = scmp.ne.s32.totalorder %s157, %s160
      %p166 = scmp.eq.s32.totalorder %s23, 0
      %p167 = por %p165, %p166
      %p168 = scmp.ne.s32.totalorder %s157, %s160
      %p169 = scmp.eq.s32.totalorder %s28, 7
      %p170 = por %p168, %p169
      %p171 = scmp.ne.s32.totalorder %s160, %s161
      %p172 = scmp.eq.s32.totalorder %s28, 0
      %p173 = por %p171, %p172
      %p174 = scmp.ne.s32.totalorder %s160, %s161
      %p175 = scmp.eq.s32.totalorder %s29, 7
      %p176 = por %p174, %p175
      %p178 = scmp.ne.s32.totalorder %s161, %s177
      %p179 = scmp.eq.s32.totalorder %s29, 0
      %p180 = por %p178, %p179
      %s181 = ssub.s32 %s30, %s42
      %p182 = scmp.eq.s32.totalorder %s181, 0
      %s184 = sadd.s32 %s183, 1
      %s185 = scalar_select %p182, %s183, %s184
      %p188 = pneg %p182
      %p189 = scmp.eq.s32.totalorder %s23, 7
      %p190 = por %p188, %p189
      %p191 = scmp.ne.s32.totalorder %s183, %s186
      %p192 = scmp.eq.s32.totalorder %s23, 0
      %p193 = por %p191, %p192
      %p194 = scmp.ne.s32.totalorder %s183, %s186
      %p195 = scmp.eq.s32.totalorder %s28, 7
      %p196 = por %p194, %p195
      %p197 = scmp.ne.s32.totalorder %s186, %s187
      %p198 = scmp.eq.s32.totalorder %s28, 0
      %p199 = por %p197, %p198
      %p200 = scmp.ne.s32.totalorder %s186, %s187
      %p201 = scmp.eq.s32.totalorder %s29, 7
      %p202 = por %p200, %p201
      %p204 = scmp.ne.s32.totalorder %s187, %s203
      %p205 = scmp.eq.s32.totalorder %s29, 0
      %p206 = por %p204, %p205
      %p207 = scmp.le.s32.totalorder 1, %s23
      %p208 = scmp.lt.s32.totalorder %s23, 9
      %p209 = pnand %p207, %p208
      %p210 = pneg %p209
      // Predicated region
      $region9: #{tpu_custom_call.1} parent=5 // pred_check
        _
      $region10: #{tpu_custom_call.1} parent=5 // pred_check_branch
        %212 = sbr.rel (%p209) target = $region12
      $region11: #{tpu_custom_call.1} parent=5 // pred_region
        %s213 = ssub.s32 %s23, 1
      $region12: #{tpu_custom_call.1} parent=5 // pred_fallthru
        _
      %p214 = scmp.lt.s32.totalorder %s23, 8
      // Predicated region
      $region13: #{tpu_custom_call.1} parent=5 // pred_check
        %p215 = pneg %p214
      $region14: #{tpu_custom_call.1} parent=5 // pred_check_branch
        %217 = sbr.rel (%p215) target = $region16
      $region15: #{tpu_custom_call.1} parent=5 // pred_region
        // Predicated region
        $region17: #{tpu_custom_call.1} parent=15 // pred_check
          %p218 = pneg %p57
        $region18: #{tpu_custom_call.1} parent=15 // pred_check_branch
          %220 = sbr.rel (%p218) target = $region20
        $region19: #{tpu_custom_call.1} parent=15 // pred_region
          %s221 = sand.u32 %s47, 1
          %s222 = scalar_lea.sflag [#allocation4], %s221
          %s223 = sand.u32 %s47, 1
          %s224 = smul.addr %s223, 8
          %s225 = scalar_lea.vmem [#allocation3], %s224
          %s227 = ssub.s32 128, 128
          %228 = vsyncadd %s222, %s227
          %s229 = smul.addr %s30, 4
          %s230 = sadd.s32 %s31, %s229
          %s231 = smul.addr %s230, 128
          %s232 = scalar_lea.hbm %s0, %s231
          %s234 = sshll.u32 %s225, 4
          %s235 = int_to_ptr.vmem [resolvable:$true] %s234
          %237 = dma.hbm_to_vmem [thread:$0]  %s232, 128, %s235, %s222
        $region20: #{tpu_custom_call.1} parent=15 // pred_fallthru
          _
        // Predicated region
        $region21: #{tpu_custom_call.1} parent=15 // pred_check
          %p238 = pneg %p85
        $region22: #{tpu_custom_call.1} parent=15 // pred_check_branch
          %240 = sbr.rel (%p238) target = $region24
        $region23: #{tpu_custom_call.1} parent=15 // pred_region
          %s241 = sand.u32 %s23, 1
          %s242 = scalar_lea.sflag [#allocation7], %s241
          %s243 = sand.u32 %s75, 1
          %s244 = smul.addr %s243, 8
          %s245 = scalar_lea.vmem [#allocation6], %s244
          %s247 = ssub.s32 128, 128
          %248 = vsyncadd %s242, %s247
          %s249 = smul.addr %s30, 4
          %s250 = sadd.s32 %s31, %s249
          %s251 = smul.addr %s250, 128
          %s252 = scalar_lea.hbm %s1, %s251
          %s254 = sshll.u32 %s245, 4
          %s255 = int_to_ptr.vmem [resolvable:$true] %s254
          %257 = dma.hbm_to_vmem [thread:$0]  %s252, 128, %s255, %s242
        $region24: #{tpu_custom_call.1} parent=15 // pred_fallthru
          _
        // Predicated region
        $region25: #{tpu_custom_call.1} parent=15 // pred_check
          %p258 = pneg %p113
        $region26: #{tpu_custom_call.1} parent=15 // pred_check_branch
          %260 = sbr.rel (%p258) target = $region28
        $region27: #{tpu_custom_call.1} parent=15 // pred_region
          %s261 = sand.u32 %s23, 1
          %s262 = scalar_lea.sflag [#allocation7], %s261
          %s263 = sand.u32 %s103, 1
          %s264 = smul.addr %s263, 8
          %s265 = scalar_lea.vmem [#allocation8], %s264
          %s267 = ssub.s32 128, 128
          %268 = vsyncadd %s262, %s267
          %s269 = smul.addr %s30, 4
          %s270 = sadd.s32 %s31, %s269
          %s271 = smul.addr %s270, 128
          %s272 = scalar_lea.hbm %s2, %s271
          %s274 = sshll.u32 %s265, 4
          %s275 = int_to_ptr.vmem [resolvable:$true] %s274
          %277 = dma.hbm_to_vmem [thread:$0]  %s272, 128, %s275, %s262
        $region28: #{tpu_custom_call.1} parent=15 // pred_fallthru
          _
        // Predicated region
        $region29: #{tpu_custom_call.1} parent=15 // pred_check
          %p278 = pneg %p141
        $region30: #{tpu_custom_call.1} parent=15 // pred_check_branch
          %280 = sbr.rel (%p278) target = $region32
        $region31: #{tpu_custom_call.1} parent=15 // pred_region
          %s281 = sand.u32 %s131, 1
          %s282 = scalar_lea.sflag [#allocation10], %s281
          %s283 = sand.u32 %s131, 1
          %s284 = smul.addr %s283, 8
          %s285 = scalar_lea.vmem [#allocation9], %s284
          %s287 = ssub.s32 128, 128
          %288 = vsyncadd %s282, %s287
          %s289 = smul.addr %s30, 4
          %s290 = sadd.s32 %s31, %s289
          %s291 = smul.addr %s290, 128
          %s292 = scalar_lea.hbm %s3, %s291
          %s294 = sshll.u32 %s285, 4
          %s295 = int_to_ptr.vmem [resolvable:$true] %s294
          %297 = dma.hbm_to_vmem [thread:$0]  %s292, 128, %s295, %s282
        $region32: #{tpu_custom_call.1} parent=15 // pred_fallthru
          _
        // Predicated region
        $region33: #{tpu_custom_call.1} parent=15 // pred_check
          %p298 = pneg %p167
        $region34: #{tpu_custom_call.1} parent=15 // pred_check_branch
          %300 = sbr.rel (%p298) target = $region36
        $region35: #{tpu_custom_call.1} parent=15 // pred_region
          %p301 = scmp.lt.s32.totalorder %s30, 1
          %s302 = scalar_select %p301, %s30, 1
          %s303 = smul.addr %s302, 8
          %s304 = scalar_lea.vmem %s4, %s303
        $region36: #{tpu_custom_call.1} parent=15 // pred_fallthru
          _
      $region16: #{tpu_custom_call.1} parent=5 // pred_fallthru
        _
      %p305 = scmp.le.s32.totalorder 1, %s23
      %p306 = scmp.lt.s32.totalorder %s23, 9
      %p307 = pnand %p305, %p306
      %p308 = pneg %p307
      // Predicated region
      $region37: #{tpu_custom_call.1} parent=5 // pred_check
        _
      $region38: #{tpu_custom_call.1} parent=5 // pred_check_branch
        %310 = sbr.rel (%p307) target = $region40
      $region39: #{tpu_custom_call.1} parent=5 // pred_region
        %s311 = ssub.s32 %s23, 1
        %s312 = sand.u32 %s50, 1
        %s313 = scalar_lea.sflag [#allocation4], %s312
        %s314 = sand.u32 %s50, 1
        %s315 = smul.addr %s314, 8
        %s316 = scalar_lea.vmem [#allocation3], %s315
        // Predicated region
        $region41: #{tpu_custom_call.1} parent=39 // pred_check
          %p317 = pneg %p63
        $region42: #{tpu_custom_call.1} parent=39 // pred_check_branch
          %319 = sbr.rel (%p317) target = $region44
        $region43: #{tpu_custom_call.1} parent=39 // pred_region
          %320 = dma.done %s313, 128
        $region44: #{tpu_custom_call.1} parent=39 // pred_fallthru
          _
        %s321 = sand.u32 %s28, 1
        %s322 = scalar_lea.sflag [#allocation7], %s321
        %s323 = sand.u32 %s78, 1
        %s324 = smul.addr %s323, 8
        %s325 = scalar_lea.vmem [#allocation6], %s324
        // Predicated region
        $region45: #{tpu_custom_call.1} parent=39 // pred_check
          %p326 = pneg %p91
        $region46: #{tpu_custom_call.1} parent=39 // pred_check_branch
          %328 = sbr.rel (%p326) target = $region48
        $region47: #{tpu_custom_call.1} parent=39 // pred_region
          %329 = dma.done %s322, 128
        $region48: #{tpu_custom_call.1} parent=39 // pred_fallthru
          _
        %s330 = sand.u32 %s28, 1
        %s331 = scalar_lea.sflag [#allocation7], %s330
        %s332 = sand.u32 %s106, 1
        %s333 = smul.addr %s332, 8
        %s334 = scalar_lea.vmem [#allocation8], %s333
        // Predicated region
        $region49: #{tpu_custom_call.1} parent=39 // pred_check
          %p335 = pneg %p119
        $region50: #{tpu_custom_call.1} parent=39 // pred_check_branch
          %337 = sbr.rel (%p335) target = $region52
        $region51: #{tpu_custom_call.1} parent=39 // pred_region
          %338 = dma.done %s331, 128
        $region52: #{tpu_custom_call.1} parent=39 // pred_fallthru
          _
        %s339 = sand.u32 %s134, 1
        %s340 = scalar_lea.sflag [#allocation10], %s339
        %s341 = sand.u32 %s134, 1
        %s342 = smul.addr %s341, 8
        %s343 = scalar_lea.vmem [#allocation9], %s342
        // Predicated region
        $region53: #{tpu_custom_call.1} parent=39 // pred_check
          %p344 = pneg %p147
        $region54: #{tpu_custom_call.1} parent=39 // pred_check_branch
          %346 = sbr.rel (%p344) target = $region56
        $region55: #{tpu_custom_call.1} parent=39 // pred_region
          %347 = dma.done %s340, 128
        $region56: #{tpu_custom_call.1} parent=39 // pred_fallthru
          _
        %s348 = sand.u32 %s50, 1
        %s349 = scalar_lea.sflag [#allocation4], %s348
        %s350 = sand.u32 %s50, 1
        %s351 = smul.addr %s350, 8
        %s352 = scalar_lea.vmem [#allocation3], %s351
        %p353 = pneg %p63
        %p354 = pneg %p60
        %s355 = sand.u32 %s28, 1
        %s356 = scalar_lea.sflag [#allocation7], %s355
        %s357 = sand.u32 %s78, 1
        %s358 = smul.addr %s357, 8
        %s359 = scalar_lea.vmem [#allocation6], %s358
        %p360 = pneg %p91
        %p361 = pneg %p88
        %s362 = sand.u32 %s28, 1
        %s363 = scalar_lea.sflag [#allocation7], %s362
        %s364 = sand.u32 %s106, 1
        %s365 = smul.addr %s364, 8
        %s366 = scalar_lea.vmem [#allocation8], %s365
        %p367 = pneg %p119
        %p368 = pneg %p116
        %s369 = sand.u32 %s134, 1
        %s370 = scalar_lea.sflag [#allocation10], %s369
        %s371 = sand.u32 %s134, 1
        %s372 = smul.addr %s371, 8
        %s373 = scalar_lea.vmem [#allocation9], %s372
        %p374 = pneg %p147
        %p375 = pneg %p144
        %p376 = scmp.lt.s32.totalorder %s32, 1
        %s377 = scalar_select %p376, %s32, 1
        %s378 = smul.addr %s377, 8
        %s379 = scalar_lea.vmem %s4, %s378
        %p380 = pneg %p173
        %p381 = pneg %p170
        %p382 = pneg %p199
        %p383 = pneg %p196
        %s384 = sand.u32 %s186, 1
        %s385 = scalar_lea.sflag [#allocation5], %s384
        %s386 = sand.u32 %s186, 1
        %s387 = smul.addr %s386, 8
        %s388 = scalar_lea.vmem [#allocation11], %s387
        %p389 = scmp.lt.s32.totalorder %s32, 1
        %s390 = scalar_select %p389, %s32, 1
        %s391 = smul.addr %s390, 8
        %s392 = scalar_lea.vmem %s4, %s391
        %p393 = scmp.eq.s32.totalorder %s33, 0
        // Predicated region
        $region57: #{tpu_custom_call.1} parent=39 // pred_check
          %p394 = pneg %p393
        $region58: #{tpu_custom_call.1} parent=39 // pred_check_branch
          %396 = sbr.rel (%p394) target = $region60
        $region59: #{tpu_custom_call.1} parent=39 // pred_region
          %vm397 = vcmask 7168
          %398 = vst.msk [vmem:[#allocation2] sm:$0xff] %vm397, 0.0
        $region60: #{tpu_custom_call.1} parent=39 // pred_fallthru
          _
        %v399 = vld [vmem:[%s316] sm:$0xff]
        %v400 = vld [vmem:[%s325] sm:$0xff]
        %v401 = vld [vmem:[%s392] sm:$0xff]
        %403 = vset.pattern.permute.xlu0 0
        %404 = vperm.xlu0 %403, %v401
        %v405 = vpop.permute.xlu0 %404
        %v407 = vmul.f32 %v400, %v405
        %v408 = vld [vmem:[%s334] sm:$0xff]
        %v409 = vld [vmem:[%s343] sm:$0xff]
        %v410 = vadd.f32 %v408, 1e-10
        %v411 = vlog2.pop %v410
        %v412 = vmul.f32 %v411, 0.6931472
        %v413 = vadd.f32 %v407, 1e-10
        %v414 = vlog2.pop %v413
        %v415 = vmul.f32 %v414, 0.6931472
        %v416 = vadd.f32 %v408, %v407
        %v417 = vadd.f32 %v416, 1e-10
        %v418 = vlog2.pop %v417
        %v419 = vmul.f32 %v418, 0.6931472
        %v420 = vmul.f32 %v410, 12.458333
        %v421 = vadd.f32 %v420, 291.3342
        %v422 = vmul.f32 %v421, %v410
        %v423 = vadd.f32 %v422, 2730.7095
        %v424 = vmul.f32 %v423, %v410
        %v425 = vadd.f32 %v424, 12860.914
        %v426 = vmul.f32 %v425, %v410
        %v427 = vadd.f32 %v426, 30517.064
        %v428 = vmul.f32 %v427, %v410
        %v429 = vadd.f32 %v428, 29249.594
        %v430 = vadd.f32 %v410, 21.0
        %v431 = vmul.f32 %v430, %v410
        %v432 = vadd.f32 %v431, 175.0
        %v433 = vmul.f32 %v432, %v410
        %v434 = vadd.f32 %v433, 735.0
        %v435 = vmul.f32 %v434, %v410
        %v436 = vadd.f32 %v435, 1624.0
        %v437 = vmul.f32 %v436, %v410
        %v438 = vadd.f32 %v437, 1764.0
        %v439 = vmul.f32 %v438, %v410
        %v440 = vadd.f32 %v439, 720.0
        %v441 = vrcp.pop %v440
        %v442 = vmul.f32 %v429, %v441
        %v443 = vadd.f32 %v442, 1.0
        %v444 = vadd.f32 %v410, 5.5
        %v445 = vadd.f32 %v410, 0.5
        %v446 = vlog2.pop %v444
        %v447 = vmul.f32 %v446, 0.6931472
        %v448 = vmul.f32 %v445, %v447
        %v449 = vsub.f32 %v444, %v448
        %v450 = vsub.f32 0.0, %v449
        %v451 = vmul.f32 %v443, 2.5066283
        %v452 = vrcp.pop %v410
        %v453 = vmul.f32 %v451, %v452
        %v454 = vlog2.pop %v453
        %v455 = vmul.f32 %v454, 0.6931472
        %v456 = vadd.f32 %v450, %v455
        %v457 = vadd.f32 %v399, 1.0
        %v458 = vmul.f32 %v457, 12.458333
        %v459 = vadd.f32 %v458, 291.3342
        %v460 = vmul.f32 %v459, %v457
        %v461 = vadd.f32 %v460, 2730.7095
        %v462 = vmul.f32 %v461, %v457
        %v463 = vadd.f32 %v462, 12860.914
        %v464 = vmul.f32 %v463, %v457
        %v465 = vadd.f32 %v464, 30517.064
        %v466 = vmul.f32 %v465, %v457
        %v467 = vadd.f32 %v466, 29249.594
        %v468 = vadd.f32 %v457, 21.0
        %v469 = vmul.f32 %v468, %v457
        %v470 = vadd.f32 %v469, 175.0
        %v471 = vmul.f32 %v470, %v457
        %v472 = vadd.f32 %v471, 735.0
        %v473 = vmul.f32 %v472, %v457
        %v474 = vadd.f32 %v473, 1624.0
        %v475 = vmul.f32 %v474, %v457
        %v476 = vadd.f32 %v475, 1764.0
        %v477 = vmul.f32 %v476, %v457
        %v478 = vadd.f32 %v477, 720.0
        %v479 = vrcp.pop %v478
        %v480 = vmul.f32 %v467, %v479
        %v481 = vadd.f32 %v480, 1.0
        %v482 = vadd.f32 %v457, 5.5
        %v483 = vadd.f32 %v457, 0.5
        %v484 = vlog2.pop %v482
        %v485 = vmul.f32 %v484, 0.6931472
        %v486 = vmul.f32 %v483, %v485
        %v487 = vsub.f32 %v482, %v486
        %v488 = vsub.f32 0.0, %v487
        %v489 = vmul.f32 %v481, 2.5066283
        %v490 = vrcp.pop %v457
        %v491 = vmul.f32 %v489, %v490
        %v492 = vlog2.pop %v491
        %v493 = vmul.f32 %v492, 0.6931472
        %v494 = vadd.f32 %v488, %v493
        %v495 = vadd.f32 %v456, %v494
        %v496 = vadd.f32 %v399, %v408
        %v497 = vadd.f32 %v496, 1e-10
        %v498 = vmul.f32 %v497, 12.458333
        %v499 = vadd.f32 %v498, 291.3342
        %v500 = vmul.f32 %v499, %v497
        %v501 = vadd.f32 %v500, 2730.7095
        %v502 = vmul.f32 %v501, %v497
        %v503 = vadd.f32 %v502, 12860.914
        %v504 = vmul.f32 %v503, %v497
        %v505 = vadd.f32 %v504, 30517.064
        %v506 = vmul.f32 %v505, %v497
        %v507 = vadd.f32 %v506, 29249.594
        %v508 = vadd.f32 %v497, 21.0
        %v509 = vmul.f32 %v508, %v497
        %v510 = vadd.f32 %v509, 175.0
        %v511 = vmul.f32 %v510, %v497
        %v512 = vadd.f32 %v511, 735.0
        %v513 = vmul.f32 %v512, %v497
        %v514 = vadd.f32 %v513, 1624.0
        %v515 = vmul.f32 %v514, %v497
        %v516 = vadd.f32 %v515, 1764.0
        %v517 = vmul.f32 %v516, %v497
        %v518 = vadd.f32 %v517, 720.0
        %v519 = vrcp.pop %v518
        %v520 = vmul.f32 %v507, %v519
        %v521 = vadd.f32 %v520, 1.0
        %v522 = vadd.f32 %v497, 5.5
        %v523 = vadd.f32 %v497, 0.5
        %v524 = vlog2.pop %v522
        %v525 = vmul.f32 %v524, 0.6931472
        %v526 = vmul.f32 %v523, %v525
        %v527 = vsub.f32 %v522, %v526
        %v528 = vsub.f32 0.0, %v527
        %v529 = vmul.f32 %v521, 2.5066283
        %v530 = vrcp.pop %v497
        %v531 = vmul.f32 %v529, %v530
        %v532 = vlog2.pop %v531
        %v533 = vmul.f32 %v532, 0.6931472
        %v534 = vadd.f32 %v528, %v533
        %v535 = vsub.f32 %v495, %v534
        %v536 = vsub.f32 %v419, %v412
        %v537 = vmul.f32 %v496, %v536
        %v538 = vsub.f32 %v412, %v415
        %v539 = vmul.f32 %v399, %v538
        %v540 = vadd.f32 %v537, %v539
        %v541 = vadd.f32 %v535, %v540
        %v542 = vsub.f32 1.0, %v409
        %v543 = vadd.f32 %v542, 1e-10
        %v544 = vlog2.pop %v543
        %v545 = vmul.f32 %v544, 0.6931472
        %v546 = vsub.f32 %v541, %v545
        %v547 = vsub.f32 %v412, %v419
        %v548 = vmul.f32 %v408, %v547
        %v549 = vmul.f32 %v548, 1.442695
        %v550 = vpow.pop %v549
        %v551 = vmul.f32 %v542, %v550
        %v552 = vadd.f32 %v409, %v551
        %v553 = vadd.f32 %v552, 1e-10
        %v554 = vlog2.pop %v553
        %v555 = vmul.f32 %v554, 0.6931472
        %v556 = vsub.f32 0.0, %v555
        %vm557 = vcmp.le.f32.partialorder %v399, 1e-08
        %v558 = vsel %vm557, %v556, %v546
        %v559 = vmul.f32 %v409, %v409
        %v560 = vmul.f32 %v559, 0.1
        %v561 = vadd.f32 %v558, %v560
        %v562 = vld [vmem:[#allocation2] sm:$0xff]
        %563 = vadd.xlane.f32.xlu0 %v561
        %v564 = vpop.xlane.xlu0 %563
        %v565 = vadd.f32 %v562, %v564
        %vm566 = vcmask 7168
        %567 = vst.msk [vmem:[#allocation2] sm:$0xff] %vm566, %v565
        %p568 = scmp.eq.s32.totalorder %s33, 3
        // Predicated region
        $region61: #{tpu_custom_call.1} parent=39 // pred_check
          %p569 = pneg %p568
        $region62: #{tpu_custom_call.1} parent=39 // pred_check_branch
          %571 = sbr.rel (%p569) target = $region64
        $region63: #{tpu_custom_call.1} parent=39 // pred_region
          %v572 = vld [vmem:[#allocation2] sm:$0xff]
          %v573 = vsel %vm566, %v572, 0.0
          %v574 = vrot.slane %v573, 4
          %v575 = vadd.f32 %v573, %v574
          %v576 = vrot.slane %v575, 2
          %v577 = vadd.f32 %v575, %v576
          %v578 = vrot.slane %v577, 1
          %v579 = vadd.f32 %v577, %v578
          %581 = vset.pattern.permute.xlu0 0
          %582 = vperm.xlu0 %581, %v579
          %v583 = vpop.permute.xlu0 %582
          %585 = vst [vmem:[%s388] sm:$0xff] %v583
        $region64: #{tpu_custom_call.1} parent=39 // pred_fallthru
          _
        %s586 = sand.u32 %s186, 1
        %s587 = scalar_lea.sflag [#allocation5], %s586
        %s588 = sand.u32 %s186, 1
        %s589 = smul.addr %s588, 8
        %s590 = scalar_lea.vmem [#allocation11], %s589
        // Predicated region
        $region65: #{tpu_custom_call.1} parent=39 // pred_check
          %p591 = pneg %p196
        $region66: #{tpu_custom_call.1} parent=39 // pred_check_branch
          %593 = sbr.rel (%p591) target = $region68
        $region67: #{tpu_custom_call.1} parent=39 // pred_region
          %s595 = ssub.s32 128, 128
          %596 = vsyncadd %s587, %s595
          %s597 = smul.addr %s32, 128
          %s598 = scalar_lea.hbm %s5, %s597
          %s600 = sshll.u32 %s590, 4
          %s601 = int_to_ptr.vmem [resolvable:$true] %s600
          %603 = dma.vmem_to_hbm [thread:$0]  %s601, 128, %s598, %s587
        $region68: #{tpu_custom_call.1} parent=39 // pred_fallthru
          _
      $region40: #{tpu_custom_call.1} parent=5 // pred_fallthru
        _
      %p604 = scmp.le.s32.totalorder 2, %s23
      // Predicated region
      $region69: #{tpu_custom_call.1} parent=5 // pred_check
        %p605 = pneg %p604
      $region70: #{tpu_custom_call.1} parent=5 // pred_check_branch
        %607 = sbr.rel (%p605) target = $region72
      $region71: #{tpu_custom_call.1} parent=5 // pred_region
        %s608 = ssub.s32 %s23, 2
        // Predicated region
        $region73: #{tpu_custom_call.1} parent=71 // pred_check
          %p609 = pneg %p202
        $region74: #{tpu_custom_call.1} parent=71 // pred_check_branch
          %611 = sbr.rel (%p609) target = $region76
        $region75: #{tpu_custom_call.1} parent=71 // pred_region
          %s612 = sand.u32 %s187, 1
          %s613 = scalar_lea.sflag [#allocation5], %s612
          %s614 = sand.u32 %s187, 1
          %s615 = smul.addr %s614, 8
          %s616 = scalar_lea.vmem [#allocation11], %s615
          %617 = dma.done %s613, 128
        $region76: #{tpu_custom_call.1} parent=71 // pred_fallthru
          _
      $region72: #{tpu_custom_call.1} parent=5 // pred_fallthru
        _
    $region6: #{tpu_custom_call.1} parent=1 // loop_footer
      %s27 = sadd.s32 1, %s23
    $region7: #{tpu_custom_call.1} parent=1 // loop_footer_branch
      %22 = sbr.rel target = $region3
    $region8: #{tpu_custom_call.1} parent=1 // loop_exit
      _
    %618 = vsyncpa [#allocation4], 1
    %s619 = scalar_lea.sflag [#allocation4], 1
    %620 = vsyncpa %s619, 1
    %621 = vsyncpa [#allocation7], 1
    %s622 = scalar_lea.sflag [#allocation7], 1
    %623 = vsyncpa %s622, 1
    %624 = vsyncpa [#allocation10], 1
    %s625 = scalar_lea.sflag [#allocation10], 1
    %626 = vsyncpa %s625, 1
    %627 = vsyncpa [#allocation5], 1
    %s628 = scalar_lea.sflag [#allocation5], 1
    %629 = vsyncpa %s628, 1

</llo_original>
